<compile_context>
chip_gen: v7x
topology: tpu7x:2x2x1
jax: 0.10.0
libtpu: 0.0.40
codegen_flags: <defaults>
</compile_context>

<pallas_src>
import functools

import jax
import jax.numpy as jnp
from jax import lax
from jax.experimental import pallas as pl
from jax.experimental.pallas import tpu as pltpu

K = 4            # kernel size of every ConvTranspose2d in the model
NEG_SLOPE = 0.2  # LeakyReLU slope
BN_EPS = 1e-5    # nn.BatchNorm2d default eps


# ----------------------------- Pallas kernels ------------------------------

def _proj_kernel(z_ref, w_ref, b_ref, y_ref):
    """Layer 1: ConvTranspose2d(k=4, s=1, p=0) on a 1x1 input == one matmul.

    z_ref: (B, Ci) bf16   w_ref: (Ci, 16*Co) bf16   b_ref: (1, 16*Co) f32
    y_ref: (B, 16*Co) f32, column order (kh, kw, co).
    """
    y = jnp.dot(z_ref[...], w_ref[...], preferred_element_type=jnp.float32)
    y_ref[...] = y + b_ref[...]


def _convt_s2_kernel(x_ref, h_ref, w_ref, b_ref, *out_refs, out_act):
    """One row-tile of ConvTranspose2d(k=4, s=2, p=1) via sub-pixel phases.

    x_ref: (tr, W+2, Ci) bf16  activated, zero-padded input rows [r*tr, r*tr+tr)
    h_ref: (2,  W+2, Ci) bf16  2-row halo directly below the main rows
    w_ref: (4, 4, Ci, Co) bf16 [phase p=2*ph+pw, tap t=2*dh+dw, ci, co]
    b_ref: (1, Co) f32
    out_refs[0]: y_ref (tr, 2, W, 2*Co) f32 phase-grouped output with
                 y[m, ph, n, pw*Co+co] == full-res out[2m+ph, 2n+pw, co]
    out_refs[1]: optional s_ref (2, Co) f32 per-tile [sum; sum-of-squares]
                 of the pre-BN output (BatchNorm batch statistics).
    """
    y_ref = out_refs[0]
    s_ref = out_refs[1] if len(out_refs) > 1 else None

    tr, Wp, Ci = x_ref.shape
    W = Wp - 2
    Co = b_ref.shape[-1]

    # Assemble the (tr + 2)-row padded tile once, then pre-shift the 3 column
    # offsets so every tap below is a cheap leading-axis slice.
    xt = jnp.concatenate([x_ref[...], h_ref[...]], axis=0)        # (tr+2, Wp, Ci)
    xcol = [xt[:, c:c + W, :] for c in range(3)]                   # (tr+2, W, Ci)

    csum = jnp.zeros((1, Co), jnp.float32)
    csq = jnp.zeros((1, Co), jnp.float32)

    for ph in range(2):
        outs = []
        for pw in range(2):
            p = 2 * ph + pw
            acc = jnp.zeros((tr * W, Co), jnp.float32)
            for dh in range(2):                 # statically unrolled 2x2 taps
                for dw in range(2):
                    t = 2 * dh + dw
                    patch = xcol[pw + dw][ph + dh:ph + dh + tr]    # (tr, W, Ci)
                    acc = acc + jnp.dot(patch.reshape(tr * W, Ci), w_ref[p, t],
                                        preferred_element_type=jnp.float32)
            out = acc + b_ref[...]                                 # (tr*W, Co)
            if out_act == "tanh":
                out = jnp.tanh(out)
            if s_ref is not None:
                csum = csum + jnp.sum(out, axis=0, keepdims=True)
                csq = csq + jnp.sum(out * out, axis=0, keepdims=True)
            outs.append(out)
        # both pw phases concatenated -> one full-lane-width store per ph.
        row = jnp.concatenate(outs, axis=1)                        # (tr*W, 2*Co)
        y_ref[:, ph:ph + 1, :, :] = row.reshape(tr, 1, W, 2 * Co).astype(y_ref.dtype)

    if s_ref is not None:
        s_ref[0:1, :] = csum
        s_ref[1:2, :] = csq


def _bn_act_pad_kernel(y_ref, sc_ref, sh_ref, o_ref):
    """y -> zero-pad(LeakyReLU(y * scale + shift)) for the next conv, one pass.

    y_ref: (H, W, C) f32   sc_ref/sh_ref: (1, 1, C) f32   o_ref: (H+2, W+2, C) bf16
    """
    H, W, _ = y_ref.shape
    o_ref[...] = jnp.zeros_like(o_ref)
    v = y_ref[...] * sc_ref[...] + sh_ref[...]
    v = jnp.where(v >= 0, v, NEG_SLOPE * v)
    o_ref[1:H + 1, 1:W + 1, :] = v.astype(o_ref.dtype)


# ------------------------------ kernel wrappers -----------------------------

def latent_project(z, w_mat, b16):
    """z: (B, Ci) bf16, w_mat: (Ci, 16*Co) bf16, b16: (16*Co,) -> (B, 4, 4, Co) f32."""
    B, Ci = z.shape
    n = w_mat.shape[-1]
    Co = n // (K * K)
    y = pl.pallas_call(
        _proj_kernel,
        out_shape=jax.ShapeDtypeStruct((B, n), jnp.float32),
        grid=(1,),
        in_specs=[
            pl.BlockSpec((B, Ci), lambda i: (0, 0)),
            pl.BlockSpec((Ci, n), lambda i: (0, 0)),
            pl.BlockSpec((1, n), lambda i: (0, 0)),
        ],
        out_specs=pl.BlockSpec((B, n), lambda i: (0, 0)),
    )(z, w_mat, b16.reshape(1, n))
    return y.reshape(B, K, K, Co)


def conv_transpose_s2(a_pad, w_ph, b, *, out_act="none", emit_stats=True,
                      max_row_tile=32):
    """ConvTranspose2d(k=4, s=2, p=1) on a zero-padded, already-activated input.

    a_pad: (B, H+2, W+2, Ci) bf16    w_ph: (4, 4, Ci, Co) bf16    b: (Co,) f32
    Returns (y, stats): y (B, 2H, 2W, Co) f32; stats (2, Co) per-channel
    [sum; sumsq] over N,H,W (or None when emit_stats=False).
    """
    B, Hp, Wp, Ci = a_pad.shape
    H, W = Hp - 2, Wp - 2
    Co = w_ph.shape[-1]
    tr = H if H <= max_row_tile else max_row_tile        # input rows per tile
    assert H % tr == 0 and tr % 2 == 0
    nrt = H // tr
    half = tr // 2                                        # halo offset in 2-row blocks

    kern = functools.partial(_convt_s2_kernel, out_act=out_act)

    y_shape = jax.ShapeDtypeStruct((B, H, 2, W, 2 * Co), jnp.float32)
    y_spec = pl.BlockSpec((None, tr, 2, W, 2 * Co), lambda bb, r: (bb, r, 0, 0, 0))
    if emit_stats:
        out_shape = (y_shape, jax.ShapeDtypeStruct((B * nrt, 2, Co), jnp.float32))
        out_specs = (y_spec,
                     pl.BlockSpec((None, 2, Co), lambda bb, r: (bb * nrt + r, 0, 0)))
    else:
        out_shape = y_shape
        out_specs = y_spec

    res = pl.pallas_call(
        kern,
        out_shape=out_shape,
        grid=(B, nrt),
        in_specs=[
            # main rows [r*tr, r*tr+tr) of the padded input
            pl.BlockSpec((None, tr, Wp, Ci), lambda bb, r: (bb, r, 0, 0)),
            # 2-row halo [r*tr+tr, r*tr+tr+2), expressed in 2-row block units
            pl.BlockSpec((None, 2, Wp, Ci), lambda bb, r: (bb, r * half + half, 0, 0)),
            pl.BlockSpec((K, K, Ci, Co), lambda bb, r: (0, 0, 0, 0)),
            pl.BlockSpec((1, Co), lambda bb, r: (0, 0)),
        ],
        out_specs=out_specs,
        compiler_params=pltpu.CompilerParams(
            dimension_semantics=("parallel", "parallel")),
    )(a_pad, a_pad, w_ph, b.reshape(1, Co))

    if emit_stats:
        y5, stats = res
        stats = jnp.sum(stats, axis=0)                    # (2, Co)
    else:
        y5, stats = res, None
    y = y5.reshape(B, 2 * H, 2 * W, Co)                   # free phase interleave
    return y, stats


def bn_act_pad(y, scale, shift):
    """Fused BN-apply + LeakyReLU + zero-pad(1) producing the next conv's input."""
    B, H, W, C = y.shape
    return pl.pallas_call(
        _bn_act_pad_kernel,
        out_shape=jax.ShapeDtypeStruct((B, H + 2, W + 2, C), jnp.bfloat16),
        grid=(B,),
        in_specs=[
            pl.BlockSpec((None, H, W, C), lambda i: (i, 0, 0, 0)),
            pl.BlockSpec((1, 1, C), lambda i: (0, 0, 0)),
            pl.BlockSpec((1, 1, C), lambda i: (0, 0, 0)),
        ],
        out_specs=pl.BlockSpec((None, H + 2, W + 2, C), lambda i: (i, 0, 0, 0)),
        compiler_params=pltpu.CompilerParams(dimension_semantics=("parallel",)),
        # TODO(synk): row-tile this pass (with first/last-tile border handling)
        # for production-size activations; whole images are tiny at this config.
    )(y, scale.reshape(1, 1, C), shift.reshape(1, 1, C))


# ------------------------------- JAX-side glue ------------------------------

def _phase_weights(w_t):
    """(Ci, Co, 4, 4) PyTorch ConvTranspose weight -> (4, 4, Ci, Co) bf16 where
    [2*ph+pw, 2*dh+dw] is the tap applied at padded-input offset (ph+dh, pw+dw)."""
    taps = []
    for ph in range(2):
        for pw in range(2):
            for dh in range(2):
                for dw in range(2):
                    taps.append(w_t[:, :, 3 - ph - 2 * dh, 3 - pw - 2 * dw])
    Ci, Co = w_t.shape[0], w_t.shape[1]
    return jnp.stack(taps, axis=0).reshape(K, K, Ci, Co).astype(jnp.bfloat16)


def _bn_scale_shift(mean, var, gamma, beta):
    var = jnp.maximum(var, 0.0)          # guard E[x^2]-E[x]^2 rounding
    scale = gamma * lax.rsqrt(var + BN_EPS)
    return scale, beta - mean * scale


def init_generator_params(key, latent_dim, ngf, channels):
    layer_defs = [
        (latent_dim, ngf * 16),
        (ngf * 16, ngf * 16),
        (ngf * 16, ngf * 8),
        (ngf * 8, ngf * 4),
        (ngf * 4, ngf * 2),
        (ngf * 2, ngf),
        (ngf, channels),
    ]
    params = []
    for li, (ci, co) in enumerate(layer_defs):
        kw_key, kb_key = jax.random.split(jax.random.fold_in(key, li))
        bound = 1.0 / float(ci * K * K) ** 0.5
        w = jax.random.uniform(kw_key, (ci, co, K, K), jnp.float32, -bound, bound)
        b = jax.random.uniform(kb_key, (co,), jnp.float32, -bound, bound)
        has_bn = li < len(layer_defs) - 1
        p = dict(
            b=b,
            gamma=jnp.ones((co,), jnp.float32) if has_bn else None,
            beta=jnp.zeros((co,), jnp.float32) if has_bn else None,
        )
        if li == 0:
            # 1x1 input, s=1, p=0:  y[b, kh, kw, co] = sum_ci z[b, ci] w[ci, co, kh, kw]
            p["w_mat"] = (jnp.transpose(w, (0, 2, 3, 1))
                          .reshape(ci, K * K * co).astype(jnp.bfloat16))
            p["b16"] = jnp.tile(b, K * K)
        else:
            p["w_ph"] = _phase_weights(w)
        params.append(p)
    return params


def generator_forward(z_nchw, params):
    """z_nchw: (B, latent_dim, 1, 1) -> (B, channels, 256, 256), matching PyTorch."""
    B = z_nchw.shape[0]
    z = z_nchw.reshape(B, -1).astype(jnp.bfloat16)

    # layer 1: latent projection, BN batch stats on the tiny (B,4,4,C) tensor in JAX
    p0 = params[0]
    y = latent_project(z, p0["w_mat"], p0["b16"])            # (B, 4, 4, ngf*16) f32
    mean = jnp.mean(y, axis=(0, 1, 2))
    var = jnp.var(y, axis=(0, 1, 2))                          # biased, as PyTorch BN
    scale, shift = _bn_scale_shift(mean, var, p0["gamma"], p0["beta"])
    a = bn_act_pad(y, scale, shift)                           # (B, 6, 6, C) bf16

    n_layers = len(params)
    out = None
    for li in range(1, n_layers):
        p = params[li]
        last = li == n_layers - 1
        y, stats = conv_transpose_s2(
            a, p["w_ph"], p["b"],
            out_act="tanh" if last else "none",
            emit_stats=not last)
        if last:
            out = y                                           # (B, 256, 256, channels)
        else:
            n = float(y.shape[0] * y.shape[1] * y.shape[2])   # N*H*W per channel
            mean = stats[0] / n
            var = stats[1] / n - mean * mean
            scale, shift = _bn_scale_shift(mean, var, p["gamma"], p["beta"])
            a = bn_act_pad(y, scale, shift)

    return jnp.transpose(out, (0, 3, 1, 2))                   # NHWC -> NCHW


# ----------------------------------- main ------------------------------------

if __name__ == "__main__":
    # Small-config instance of the module: latent_dim=16, ngf=8, channels=1
    # (original defaults are latent_dim=100, ngf=224; architecture identical).
    latent_dim, ngf, channels, batch = 16, 8, 1, 2

    key = jax.random.PRNGKey(0)
    params = init_generator_params(jax.random.fold_in(key, 100),
                                   latent_dim, ngf, channels)
    z = jax.random.normal(jax.random.fold_in(key, 200),
                          (batch, latent_dim, 1, 1), jnp.float32)

    out = generator_forward(z, params)
    out = jax.block_until_ready(out)

    assert out.shape == (batch, channels, 256, 256), out.shape
    assert bool(jnp.all(jnp.isfinite(out)))
    assert bool(jnp.all(jnp.abs(out) <= 1.0 + 1e-6))          # tanh output range
    print("KERNEL_OK")
</pallas_src>

<mosaic_0001>
module attributes {stable_mosaic.version = 11 : i64} {
  func.func @_proj_kernel(%arg0: i32, %arg1: memref<2x16xbf16, #tpu.memory_space<vmem>>, %arg2: memref<16x2048xbf16, #tpu.memory_space<vmem>>, %arg3: memref<1x2048xf32, #tpu.memory_space<vmem>>, %arg4: memref<2x2048xf32, #tpu.memory_space<vmem>>) attributes {dimension_semantics = [#tpu.dimension_semantics<arbitrary>], iteration_bounds = array<i64: 1>, scalar_prefetch = 0 : i64, scratch_operands = 0 : i64, tpu.core_type = #tpu.core_type<tc>, window_params = [{pipeline_mode = #tpu.pipeline_mode<synchronous>, transform_indices = @transform_0, window_bounds = array<i64: 2, 16>}, {pipeline_mode = #tpu.pipeline_mode<synchronous>, transform_indices = @transform_1, window_bounds = array<i64: 16, 2048>}, {pipeline_mode = #tpu.pipeline_mode<synchronous>, transform_indices = @transform_2, window_bounds = array<i64: 1, 2048>}, {pipeline_mode = #tpu.pipeline_mode<synchronous>, transform_indices = @transform_3, window_bounds = array<i64: 2, 2048>}]} {
    %c0 = arith.constant 0 : index
    %c0_0 = arith.constant 0 : index
    %0 = vector.load %arg1[%c0, %c0_0] : memref<2x16xbf16, #tpu.memory_space<vmem>>, vector<2x16xbf16>
    %c0_1 = arith.constant 0 : index
    %c0_2 = arith.constant 0 : index
    %1 = vector.load %arg2[%c0_1, %c0_2] : memref<16x2048xbf16, #tpu.memory_space<vmem>>, vector<16x2048xbf16>
    %cst = arith.constant dense<0.000000e+00> : vector<2x2048xf32>
    %2 = tpu.matmul %0, %1, %cst {dimension_numbers = #tpu.dot_dimension_numbers<[1], [0], [0], [1], [0, 0, 1, 1], [], []>} : vector<2x16xbf16>, vector<16x2048xbf16>, vector<2x2048xf32> -> vector<2x2048xf32>
    %c0_3 = arith.constant 0 : index
    %c0_4 = arith.constant 0 : index
    %3 = vector.load %arg3[%c0_3, %c0_4] : memref<1x2048xf32, #tpu.memory_space<vmem>>, vector<1x2048xf32>
    %4 = vector.broadcast %3 : vector<1x2048xf32> to vector<2x2048xf32>
    %5 = arith.addf %2, %4 : vector<2x2048xf32>
    %c0_5 = arith.constant 0 : index
    %c0_6 = arith.constant 0 : index
    %6 = vector.load %arg4[%c0_5, %c0_6] : memref<2x2048xf32, #tpu.memory_space<vmem>>, vector<2x2048xf32>
    tpu.vector_store %arg4[%c0_5, %c0_6], %5 {strides = array<i32>} : memref<2x2048xf32, #tpu.memory_space<vmem>>, vector<2x2048xf32>,
    return
  }
  func.func @transform_0(%arg0: i32) -> (i32, i32) {
    %c0_i32 = arith.constant 0 : i32
    %c0_i32_0 = arith.constant 0 : i32
    %c0_i32_1 = arith.constant 0 : i32
    return %c0_i32, %c0_i32_0 : i32, i32
  }
  func.func @transform_1(%arg0: i32) -> (i32, i32) {
    %c0_i32 = arith.constant 0 : i32
    %c0_i32_0 = arith.constant 0 : i32
    %c0_i32_1 = arith.constant 0 : i32
    return %c0_i32, %c0_i32_0 : i32, i32
  }
  func.func @transform_2(%arg0: i32) -> (i32, i32) {
    %c0_i32 = arith.constant 0 : i32
    %c0_i32_0 = arith.constant 0 : i32
    %c0_i32_1 = arith.constant 0 : i32
    return %c0_i32, %c0_i32_0 : i32, i32
  }
  func.func @transform_3(%arg0: i32) -> (i32, i32) {
    %c0_i32 = arith.constant 0 : i32
    %c0_i32_0 = arith.constant 0 : i32
    %c0_i32_1 = arith.constant 0 : i32
    return %c0_i32, %c0_i32_0 : i32, i32
  }
}

</mosaic_0001>

<llo_original>
// kernel: tpu_custom_call.1
$region0: #{tpu_custom_call.1}
  #allocation0 [shape = 'u32[]', space=smem, size = 0x4, offset = 0x4, fixed_abs, tag = 'smem constant byte address 0x4 - core index']
  #allocation1 [shape = 'u32[144,128]{1,0:T(1,128)}', space=vmem, size = 0x12000, scoped, tag = 'internal scratch']
  %s0 = inlined_call_operand.hbm [shape: bf16[2,16], index: 0, kind: input, shape index: {}]
  %s1 = inlined_call_operand.hbm [shape: bf16[16,2048], index: 1, kind: input, shape index: {}]
  %s2 = inlined_call_operand.hbm [shape: f32[1,2048], index: 2, kind: input, shape index: {}]
  %s3 = inlined_call_operand.hbm [shape: f32[2,2048], index: 3, kind: output, shape index: {}]
  %s4 = sld [smem:[#allocation0]]
  $region34: #{tpu_custom_call.1} parent=0
    _
  %s6 = ssub.s32 1, %s4
  %s7 = scalar_select 0, %s6, %s4
  $region1: #{tpu_custom_call.1} parent=0
    #allocation2 [shape = 'u8[512]{0}', space=vmem, size = 0x400, scoped, tag = 'input window, operand 0, single buffered']
    #allocation3 [shape = 's32[1]{0}', space=sflag, size = 0x4, scoped, tag = 'scoped memory for tpu_custom_call.1']
    #allocation4 [shape = 's32[1]{0}', space=sflag, size = 0x4, scoped, tag = 'scoped memory for tpu_custom_call.1']
    #allocation5 [shape = 'u8[65536]{0}', space=vmem, size = 0x10000, scoped, tag = 'input window, operand 1, single buffered']
    #allocation6 [shape = 's32[1]{0}', space=sflag, size = 0x4, scoped, tag = 'scoped memory for tpu_custom_call.1']
    #allocation7 [shape = 'u8[8192]{0}', space=vmem, size = 0x2000, scoped, tag = 'input window, operand 2, single buffered']
    #allocation8 [shape = 'u8[16384]{0}', space=vmem, size = 0x4000, scoped, tag = 'output window, operand 0, single buffered']
    %8 = vsyncpa [#allocation3], 0
    %9 = vsyncpa [#allocation6], 0
    %10 = vsyncpa [#allocation4], 0
    // Predicated region
    $region2: #{tpu_custom_call.1} parent=1 // pred_check
      _
    $region3: #{tpu_custom_call.1} parent=1 // pred_check_branch
      %12 = sbr.rel (0) target = $region5
    $region4: #{tpu_custom_call.1} parent=1 // pred_region
      %s14 = ssub.s32 16, 16
      %15 = vsyncadd [#allocation3], %s14
      %s17 = sshll.u32 [#allocation2], 4
      %s18 = int_to_ptr.vmem [resolvable:$true] %s17
      %20 = dma.hbm_to_vmem [thread:$0]  %s0, 16, %s18, [#allocation3]
    $region5: #{tpu_custom_call.1} parent=1 // pred_fallthru
      _
    // Predicated region
    $region6: #{tpu_custom_call.1} parent=1 // pred_check
      _
    $region7: #{tpu_custom_call.1} parent=1 // pred_check_branch
      %22 = sbr.rel (0) target = $region9
    $region8: #{tpu_custom_call.1} parent=1 // pred_region
      %s24 = ssub.s32 2048, 2048
      %25 = vsyncadd [#allocation6], %s24
      %s26 = sshll.u32 [#allocation5], 4
      %s27 = int_to_ptr.vmem [resolvable:$true] %s26
      %32 = dma.hbm_to_vmem [thread:$0]  %s1, 2048, %s27, [#allocation6], 1024, 1024, 64
    $region9: #{tpu_custom_call.1} parent=1 // pred_fallthru
      _
    // Predicated region
    $region10: #{tpu_custom_call.1} parent=1 // pred_check
      _
    $region11: #{tpu_custom_call.1} parent=1 // pred_check_branch
      %34 = sbr.rel (0) target = $region13
    $region12: #{tpu_custom_call.1} parent=1 // pred_region
      %s36 = ssub.s32 256, 256
      %37 = vsyncadd [#allocation6], %s36
      %s39 = sshll.u32 [#allocation7], 4
      %s40 = int_to_ptr.vmem [resolvable:$true] %s39
      %42 = dma.hbm_to_vmem [thread:$0]  %s2, 256, %s40, [#allocation6]
    $region13: #{tpu_custom_call.1} parent=1 // pred_fallthru
      _
    // Predicated region
    $region14: #{tpu_custom_call.1} parent=1 // pred_check
      _
    $region15: #{tpu_custom_call.1} parent=1 // pred_check_branch
      %44 = sbr.rel (0) target = $region17
    $region16: #{tpu_custom_call.1} parent=1 // pred_region
      %45 = dma.done [#allocation3], 16
    $region17: #{tpu_custom_call.1} parent=1 // pred_fallthru
      _
    // Predicated region
    $region18: #{tpu_custom_call.1} parent=1 // pred_check
      _
    $region19: #{tpu_custom_call.1} parent=1 // pred_check_branch
      %47 = sbr.rel (0) target = $region21
    $region20: #{tpu_custom_call.1} parent=1 // pred_region
      %48 = dma.done [#allocation6], 2048
    $region21: #{tpu_custom_call.1} parent=1 // pred_fallthru
      _
    // Predicated region
    $region22: #{tpu_custom_call.1} parent=1 // pred_check
      _
    $region23: #{tpu_custom_call.1} parent=1 // pred_check_branch
      %50 = sbr.rel (0) target = $region25
    $region24: #{tpu_custom_call.1} parent=1 // pred_region
      %51 = dma.done [#allocation6], 256
    $region25: #{tpu_custom_call.1} parent=1 // pred_fallthru
      _
    %v53 = vld [vmem:[#allocation2] sm:$0x1]
    %v54 = vld [vmem:[#allocation5] sm:$0xff]
    %v55 = vld [vmem:[#allocation5 + $0x8] sm:$0xff]
    %v56 = vld [vmem:[#allocation5 + $0x10] sm:$0xff]
    %v57 = vld [vmem:[#allocation5 + $0x18] sm:$0xff]
    %v58 = vld [vmem:[#allocation5 + $0x20] sm:$0xff]
    %v59 = vld [vmem:[#allocation5 + $0x28] sm:$0xff]
    %v60 = vld [vmem:[#allocation5 + $0x30] sm:$0xff]
    %v61 = vld [vmem:[#allocation5 + $0x38] sm:$0xff]
    %v62 = vld [vmem:[#allocation5 + $0x40] sm:$0xff]
    %v63 = vld [vmem:[#allocation5 + $0x48] sm:$0xff]
    %v64 = vld [vmem:[#allocation5 + $0x50] sm:$0xff]
    %v65 = vld [vmem:[#allocation5 + $0x58] sm:$0xff]
    %v66 = vld [vmem:[#allocation5 + $0x60] sm:$0xff]
    %v67 = vld [vmem:[#allocation5 + $0x68] sm:$0xff]
    %v68 = vld [vmem:[#allocation5 + $0x70] sm:$0xff]
    %v69 = vld [vmem:[#allocation5 + $0x78] sm:$0xff]
    %v70 = vld [vmem:[#allocation7] sm:$0xff]
    %v71 = vld [vmem:[#allocation7 + $0x8] sm:$0xff]
    %v74 = vlaneseq
    %v75 = vshrl.u32 %v74, 7
    %v76 = vsub.s32 0, %v75
    %v77 = vrot.slane %v70, %v76
    %v78 = vlaneseq
    %v79 = vshrl.u32 %v78, 7
    %v80 = vsub.s32 1, %v79
    %v81 = vrot.slane %v70, %v80
    %v82 = vlaneseq
    %v83 = vshrl.u32 %v82, 7
    %v84 = vsub.s32 2, %v83
    %v85 = vrot.slane %v70, %v84
    %v86 = vlaneseq
    %v87 = vshrl.u32 %v86, 7
    %v88 = vsub.s32 3, %v87
    %v89 = vrot.slane %v70, %v88
    %v90 = vlaneseq
    %v91 = vshrl.u32 %v90, 7
    %v92 = vsub.s32 4, %v91
    %v93 = vrot.slane %v70, %v92
    %v94 = vlaneseq
    %v95 = vshrl.u32 %v94, 7
    %v96 = vsub.s32 5, %v95
    %v97 = vrot.slane %v70, %v96
    %v98 = vlaneseq
    %v99 = vshrl.u32 %v98, 7
    %v100 = vsub.s32 6, %v99
    %v101 = vrot.slane %v70, %v100
    %v102 = vlaneseq
    %v103 = vshrl.u32 %v102, 7
    %v104 = vsub.s32 7, %v103
    %v105 = vrot.slane %v70, %v104
    %v106 = vlaneseq
    %v107 = vshrl.u32 %v106, 7
    %v108 = vsub.s32 0, %v107
    %v109 = vrot.slane %v71, %v108
    %v110 = vlaneseq
    %v111 = vshrl.u32 %v110, 7
    %v112 = vsub.s32 1, %v111
    %v113 = vrot.slane %v71, %v112
    %v114 = vlaneseq
    %v115 = vshrl.u32 %v114, 7
    %v116 = vsub.s32 2, %v115
    %v117 = vrot.slane %v71, %v116
    %v118 = vlaneseq
    %v119 = vshrl.u32 %v118, 7
    %v120 = vsub.s32 3, %v119
    %v121 = vrot.slane %v71, %v120
    %v122 = vlaneseq
    %v123 = vshrl.u32 %v122, 7
    %v124 = vsub.s32 4, %v123
    %v125 = vrot.slane %v71, %v124
    %v126 = vlaneseq
    %v127 = vshrl.u32 %v126, 7
    %v128 = vsub.s32 5, %v127
    %v129 = vrot.slane %v71, %v128
    %v130 = vlaneseq
    %v131 = vshrl.u32 %v130, 7
    %v132 = vsub.s32 6, %v131
    %v133 = vrot.slane %v71, %v132
    %v134 = vlaneseq
    %v135 = vshrl.u32 %v134, 7
    %v136 = vsub.s32 7, %v135
    %v137 = vrot.slane %v71, %v136
    %v170 = vunpack.c.l.b16 %v54
    %v171 = vunpack.c.h.b16 %v54
    %v172 = vunpack.c.l.b16 %v55
    %v173 = vunpack.c.h.b16 %v55
    %v174 = vunpack.c.l.b16 %v56
    %v175 = vunpack.c.h.b16 %v56
    %v176 = vunpack.c.l.b16 %v57
    %v177 = vunpack.c.h.b16 %v57
    %v178 = vunpack.c.l.b16 %v58
    %v179 = vunpack.c.h.b16 %v58
    %v180 = vunpack.c.l.b16 %v59
    %v181 = vunpack.c.h.b16 %v59
    %v182 = vunpack.c.l.b16 %v60
    %v183 = vunpack.c.h.b16 %v60
    %v184 = vunpack.c.l.b16 %v61
    %v185 = vunpack.c.h.b16 %v61
    %v186 = vunpack.c.l.b16 %v62
    %v187 = vunpack.c.h.b16 %v62
    %v188 = vunpack.c.l.b16 %v63
    %v189 = vunpack.c.h.b16 %v63
    %v190 = vunpack.c.l.b16 %v64
    %v191 = vunpack.c.h.b16 %v64
    %v192 = vunpack.c.l.b16 %v65
    %v193 = vunpack.c.h.b16 %v65
    %v194 = vunpack.c.l.b16 %v66
    %v195 = vunpack.c.h.b16 %v66
    %v196 = vunpack.c.l.b16 %v67
    %v197 = vunpack.c.h.b16 %v67
    %v198 = vunpack.c.l.b16 %v68
    %v199 = vunpack.c.h.b16 %v68
    %v200 = vunpack.c.l.b16 %v69
    %v201 = vunpack.c.h.b16 %v69
    %v202 = vpack.c.b16 %v186, %v170
    %v203 = vpack.c.b16 %v187, %v171
    %v204 = vpack.c.b16 %v188, %v172
    %v205 = vpack.c.b16 %v189, %v173
    %v206 = vpack.c.b16 %v190, %v174
    %v207 = vpack.c.b16 %v191, %v175
    %v208 = vpack.c.b16 %v192, %v176
    %v209 = vpack.c.b16 %v193, %v177
    %v210 = vpack.c.b16 %v194, %v178
    %v211 = vpack.c.b16 %v195, %v179
    %v212 = vpack.c.b16 %v196, %v180
    %v213 = vpack.c.b16 %v197, %v181
    %v214 = vpack.c.b16 %v198, %v182
    %v215 = vpack.c.b16 %v199, %v183
    %v216 = vpack.c.b16 %v200, %v184
    %v217 = vpack.c.b16 %v201, %v185
    %vm234 = vcmask 130048
    %v236 = vsel %vm234, %v53, 0
    %238 = vmatprep.subr.bf16.mxu0 %v203
    %239 = vmatpush1.bf16.msra.mxu0 %v202
    %240 = vmatprep.subr.bf16.mxu0 0
    %241 = vmatpush1.bf16.msra.mxu0 0
    %242 = vmatprep.subr.bf16.mxu0 0
    %243 = vmatpush1.bf16.msra.mxu0 0
    %244 = vmatprep.subr.bf16.mxu0 0
    %245 = vmatpush1.bf16.msra.mxu0 0
    %246 = vmatprep.subr.bf16.mxu0 0
    %247 = vmatpush1.bf16.msra.mxu0 0
    %248 = vmatprep.subr.bf16.mxu0 0
    %249 = vmatpush1.bf16.msra.mxu0 0
    %250 = vmatprep.subr.bf16.mxu0 0
    %251 = vmatpush1.bf16.msra.mxu0 0
    %252 = vmatprep.subr.bf16.mxu0 0
    %253 = vmatpush1.bf16.msra.mxu0 0
    %254 = vmatprep.subr.bf16.mxu0 0
    %255 = vmatpush1.bf16.msra.mxu0 0
    %256 = vmatprep.subr.bf16.mxu0 0
    %257 = vmatpush1.bf16.msra.mxu0 0
    %258 = vmatprep.subr.bf16.mxu0 0
    %259 = vmatpush1.bf16.msra.mxu0 0
    %260 = vmatprep.subr.bf16.mxu0 0
    %261 = vmatpush1.bf16.msra.mxu0 0
    %262 = vmatprep.subr.bf16.mxu0 0
    %263 = vmatpush1.bf16.msra.mxu0 0
    %264 = vmatprep.subr.bf16.mxu0 0
    %265 = vmatpush1.bf16.msra.mxu0 0
    %266 = vmatprep.subr.bf16.mxu0 0
    %267 = vmatpush1.bf16.msra.mxu0 0
    %268 = vmatprep.subr.bf16.mxu0 0
    %269 = vmatpush1.bf16.msra.mxu0 0
    %270 = vmatprep.mubr.bf16.mxu0 0
    %271 = vmatmul.mubr.bf16.gmra.mrb[0].mxu0 %v236
    %v272 = vpop.f32.mrb[0].mxu0
    %v273 = vadd.f32 %v77, %v272
    %v274 = vpop.f32.mrb[0].mxu0
    %v275 = vadd.f32 %v81, %v274
    %v276 = vpop.f32.mrb[0].mxu0
    %v277 = vpop.f32.mrb[0].mxu0
    %278 = vdwg.mxu0
    %279 = vmatprep.subr.bf16.mxu0 %v205
    %280 = vmatpush1.bf16.msra.mxu0 %v204
    %281 = vmatprep.subr.bf16.mxu0 0
    %282 = vmatpush1.bf16.msra.mxu0 0
    %283 = vmatprep.subr.bf16.mxu0 0
    %284 = vmatpush1.bf16.msra.mxu0 0
    %285 = vmatprep.subr.bf16.mxu0 0
    %286 = vmatpush1.bf16.msra.mxu0 0
    %287 = vmatprep.subr.bf16.mxu0 0
    %288 = vmatpush1.bf16.msra.mxu0 0
    %289 = vmatprep.subr.bf16.mxu0 0
    %290 = vmatpush1.bf16.msra.mxu0 0
    %291 = vmatprep.subr.bf16.mxu0 0
    %292 = vmatpush1.bf16.msra.mxu0 0
    %293 = vmatprep.subr.bf16.mxu0 0
    %294 = vmatpush1.bf16.msra.mxu0 0
    %295 = vmatprep.subr.bf16.mxu0 0
    %296 = vmatpush1.bf16.msra.mxu0 0
    %297 = vmatprep.subr.bf16.mxu0 0
    %298 = vmatpush1.bf16.msra.mxu0 0
    %299 = vmatprep.subr.bf16.mxu0 0
    %300 = vmatpush1.bf16.msra.mxu0 0
    %301 = vmatprep.subr.bf16.mxu0 0
    %302 = vmatpush1.bf16.msra.mxu0 0
    %303 = vmatprep.subr.bf16.mxu0 0
    %304 = vmatpush1.bf16.msra.mxu0 0
    %305 = vmatprep.subr.bf16.mxu0 0
    %306 = vmatpush1.bf16.msra.mxu0 0
    %307 = vmatprep.subr.bf16.mxu0 0
    %308 = vmatpush1.bf16.msra.mxu0 0
    %309 = vmatprep.subr.bf16.mxu0 0
    %310 = vmatpush1.bf16.msra.mxu0 0
    %311 = vmatprep.mubr.bf16.mxu0 0
    %312 = vmatmul.mubr.bf16.gmra.mrb[0].mxu0 %v236
    %v313 = vpop.f32.mrb[0].mxu0
    %v314 = vadd.f32 %v85, %v313
    %v315 = vpop.f32.mrb[0].mxu0
    %v316 = vadd.f32 %v89, %v315
    %v317 = vpop.f32.mrb[0].mxu0
    %v318 = vpop.f32.mrb[0].mxu0
    %319 = vdwg.mxu0
    %320 = vmatprep.subr.bf16.mxu0 %v207
    %321 = vmatpush1.bf16.msra.mxu0 %v206
    %322 = vmatprep.subr.bf16.mxu0 0
    %323 = vmatpush1.bf16.msra.mxu0 0
    %324 = vmatprep.subr.bf16.mxu0 0
    %325 = vmatpush1.bf16.msra.mxu0 0
    %326 = vmatprep.subr.bf16.mxu0 0
    %327 = vmatpush1.bf16.msra.mxu0 0
    %328 = vmatprep.subr.bf16.mxu0 0
    %329 = vmatpush1.bf16.msra.mxu0 0
    %330 = vmatprep.subr.bf16.mxu0 0
    %331 = vmatpush1.bf16.msra.mxu0 0
    %332 = vmatprep.subr.bf16.mxu0 0
    %333 = vmatpush1.bf16.msra.mxu0 0
    %334 = vmatprep.subr.bf16.mxu0 0
    %335 = vmatpush1.bf16.msra.mxu0 0
    %336 = vmatprep.subr.bf16.mxu0 0
    %337 = vmatpush1.bf16.msra.mxu0 0
    %338 = vmatprep.subr.bf16.mxu0 0
    %339 = vmatpush1.bf16.msra.mxu0 0
    %340 = vmatprep.subr.bf16.mxu0 0
    %341 = vmatpush1.bf16.msra.mxu0 0
    %342 = vmatprep.subr.bf16.mxu0 0
    %343 = vmatpush1.bf16.msra.mxu0 0
    %344 = vmatprep.subr.bf16.mxu0 0
    %345 = vmatpush1.bf16.msra.mxu0 0
    %346 = vmatprep.subr.bf16.mxu0 0
    %347 = vmatpush1.bf16.msra.mxu0 0
    %348 = vmatprep.subr.bf16.mxu0 0
    %349 = vmatpush1.bf16.msra.mxu0 0
    %350 = vmatprep.subr.bf16.mxu0 0
    %351 = vmatpush1.bf16.msra.mxu0 0
    %352 = vmatprep.mubr.bf16.mxu0 0
    %353 = vmatmul.mubr.bf16.gmra.mrb[0].mxu0 %v236
    %v354 = vpop.f32.mrb[0].mxu0
    %v355 = vadd.f32 %v93, %v354
    %v356 = vpop.f32.mrb[0].mxu0
    %v357 = vadd.f32 %v97, %v356
    %v358 = vpop.f32.mrb[0].mxu0
    %v359 = vpop.f32.mrb[0].mxu0
    %360 = vdwg.mxu0
    %361 = vmatprep.subr.bf16.mxu0 %v209
    %362 = vmatpush1.bf16.msra.mxu0 %v208
    %363 = vmatprep.subr.bf16.mxu0 0
    %364 = vmatpush1.bf16.msra.mxu0 0
    %365 = vmatprep.subr.bf16.mxu0 0
    %366 = vmatpush1.bf16.msra.mxu0 0
    %367 = vmatprep.subr.bf16.mxu0 0
    %368 = vmatpush1.bf16.msra.mxu0 0
    %369 = vmatprep.subr.bf16.mxu0 0
    %370 = vmatpush1.bf16.msra.mxu0 0
    %371 = vmatprep.subr.bf16.mxu0 0
    %372 = vmatpush1.bf16.msra.mxu0 0
    %373 = vmatprep.subr.bf16.mxu0 0
    %374 = vmatpush1.bf16.msra.mxu0 0
    %375 = vmatprep.subr.bf16.mxu0 0
    %376 = vmatpush1.bf16.msra.mxu0 0
    %377 = vmatprep.subr.bf16.mxu0 0
    %378 = vmatpush1.bf16.msra.mxu0 0
    %379 = vmatprep.subr.bf16.mxu0 0
    %380 = vmatpush1.bf16.msra.mxu0 0
    %381 = vmatprep.subr.bf16.mxu0 0
    %382 = vmatpush1.bf16.msra.mxu0 0
    %383 = vmatprep.subr.bf16.mxu0 0
    %384 = vmatpush1.bf16.msra.mxu0 0
    %385 = vmatprep.subr.bf16.mxu0 0
    %386 = vmatpush1.bf16.msra.mxu0 0
    %387 = vmatprep.subr.bf16.mxu0 0
    %388 = vmatpush1.bf16.msra.mxu0 0
    %389 = vmatprep.subr.bf16.mxu0 0
    %390 = vmatpush1.bf16.msra.mxu0 0
    %391 = vmatprep.subr.bf16.mxu0 0
    %392 = vmatpush1.bf16.msra.mxu0 0
    %393 = vmatprep.mubr.bf16.mxu0 0
    %394 = vmatmul.mubr.bf16.gmra.mrb[0].mxu0 %v236
    %v395 = vpop.f32.mrb[0].mxu0
    %v396 = vadd.f32 %v101, %v395
    %v397 = vpop.f32.mrb[0].mxu0
    %v398 = vadd.f32 %v105, %v397
    %v399 = vpop.f32.mrb[0].mxu0
    %v400 = vpop.f32.mrb[0].mxu0
    %401 = vdwg.mxu0
    %402 = vmatprep.subr.bf16.mxu0 %v211
    %403 = vmatpush1.bf16.msra.mxu0 %v210
    %404 = vmatprep.subr.bf16.mxu0 0
    %405 = vmatpush1.bf16.msra.mxu0 0
    %406 = vmatprep.subr.bf16.mxu0 0
    %407 = vmatpush1.bf16.msra.mxu0 0
    %408 = vmatprep.subr.bf16.mxu0 0
    %409 = vmatpush1.bf16.msra.mxu0 0
    %410 = vmatprep.subr.bf16.mxu0 0
    %411 = vmatpush1.bf16.msra.mxu0 0
    %412 = vmatprep.subr.bf16.mxu0 0
    %413 = vmatpush1.bf16.msra.mxu0 0
    %414 = vmatprep.subr.bf16.mxu0 0
    %415 = vmatpush1.bf16.msra.mxu0 0
    %416 = vmatprep.subr.bf16.mxu0 0
    %417 = vmatpush1.bf16.msra.mxu0 0
    %418 = vmatprep.subr.bf16.mxu0 0
    %419 = vmatpush1.bf16.msra.mxu0 0
    %420 = vmatprep.subr.bf16.mxu0 0
    %421 = vmatpush1.bf16.msra.mxu0 0
    %422 = vmatprep.subr.bf16.mxu0 0
    %423 = vmatpush1.bf16.msra.mxu0 0
    %424 = vmatprep.subr.bf16.mxu0 0
    %425 = vmatpush1.bf16.msra.mxu0 0
    %426 = vmatprep.subr.bf16.mxu0 0
    %427 = vmatpush1.bf16.msra.mxu0 0
    %428 = vmatprep.subr.bf16.mxu0 0
    %429 = vmatpush1.bf16.msra.mxu0 0
    %430 = vmatprep.subr.bf16.mxu0 0
    %431 = vmatpush1.bf16.msra.mxu0 0
    %432 = vmatprep.subr.bf16.mxu0 0
    %433 = vmatpush1.bf16.msra.mxu0 0
    %434 = vmatprep.mubr.bf16.mxu0 0
    %435 = vmatmul.mubr.bf16.gmra.mrb[0].mxu0 %v236
    %v436 = vpop.f32.mrb[0].mxu0
    %v437 = vadd.f32 %v109, %v436
    %v438 = vpop.f32.mrb[0].mxu0
    %v439 = vadd.f32 %v113, %v438
    %v440 = vpop.f32.mrb[0].mxu0
    %v441 = vpop.f32.mrb[0].mxu0
    %442 = vdwg.mxu0
    %443 = vmatprep.subr.bf16.mxu0 %v213
    %444 = vmatpush1.bf16.msra.mxu0 %v212
    %445 = vmatprep.subr.bf16.mxu0 0
    %446 = vmatpush1.bf16.msra.mxu0 0
    %447 = vmatprep.subr.bf16.mxu0 0
    %448 = vmatpush1.bf16.msra.mxu0 0
    %449 = vmatprep.subr.bf16.mxu0 0
    %450 = vmatpush1.bf16.msra.mxu0 0
    %451 = vmatprep.subr.bf16.mxu0 0
    %452 = vmatpush1.bf16.msra.mxu0 0
    %453 = vmatprep.subr.bf16.mxu0 0
    %454 = vmatpush1.bf16.msra.mxu0 0
    %455 = vmatprep.subr.bf16.mxu0 0
    %456 = vmatpush1.bf16.msra.mxu0 0
    %457 = vmatprep.subr.bf16.mxu0 0
    %458 = vmatpush1.bf16.msra.mxu0 0
    %459 = vmatprep.subr.bf16.mxu0 0
    %460 = vmatpush1.bf16.msra.mxu0 0
    %461 = vmatprep.subr.bf16.mxu0 0
    %462 = vmatpush1.bf16.msra.mxu0 0
    %463 = vmatprep.subr.bf16.mxu0 0
    %464 = vmatpush1.bf16.msra.mxu0 0
    %465 = vmatprep.subr.bf16.mxu0 0
    %466 = vmatpush1.bf16.msra.mxu0 0
    %467 = vmatprep.subr.bf16.mxu0 0
    %468 = vmatpush1.bf16.msra.mxu0 0
    %469 = vmatprep.subr.bf16.mxu0 0
    %470 = vmatpush1.bf16.msra.mxu0 0
    %471 = vmatprep.subr.bf16.mxu0 0
    %472 = vmatpush1.bf16.msra.mxu0 0
    %473 = vmatprep.subr.bf16.mxu0 0
    %474 = vmatpush1.bf16.msra.mxu0 0
    %475 = vmatprep.mubr.bf16.mxu0 0
    %476 = vmatmul.mubr.bf16.gmra.mrb[0].mxu0 %v236
    %v477 = vpop.f32.mrb[0].mxu0
    %v478 = vadd.f32 %v117, %v477
    %v479 = vpop.f32.mrb[0].mxu0
    %v480 = vadd.f32 %v121, %v479
    %v481 = vpop.f32.mrb[0].mxu0
    %v482 = vpop.f32.mrb[0].mxu0
    %483 = vdwg.mxu0
    %484 = vmatprep.subr.bf16.mxu0 %v215
    %485 = vmatpush1.bf16.msra.mxu0 %v214
    %486 = vmatprep.subr.bf16.mxu0 0
    %487 = vmatpush1.bf16.msra.mxu0 0
    %488 = vmatprep.subr.bf16.mxu0 0
    %489 = vmatpush1.bf16.msra.mxu0 0
    %490 = vmatprep.subr.bf16.mxu0 0
    %491 = vmatpush1.bf16.msra.mxu0 0
    %492 = vmatprep.subr.bf16.mxu0 0
    %493 = vmatpush1.bf16.msra.mxu0 0
    %494 = vmatprep.subr.bf16.mxu0 0
    %495 = vmatpush1.bf16.msra.mxu0 0
    %496 = vmatprep.subr.bf16.mxu0 0
    %497 = vmatpush1.bf16.msra.mxu0 0
    %498 = vmatprep.subr.bf16.mxu0 0
    %499 = vmatpush1.bf16.msra.mxu0 0
    %500 = vmatprep.subr.bf16.mxu0 0
    %501 = vmatpush1.bf16.msra.mxu0 0
    %502 = vmatprep.subr.bf16.mxu0 0
    %503 = vmatpush1.bf16.msra.mxu0 0
    %504 = vmatprep.subr.bf16.mxu0 0
    %505 = vmatpush1.bf16.msra.mxu0 0
    %506 = vmatprep.subr.bf16.mxu0 0
    %507 = vmatpush1.bf16.msra.mxu0 0
    %508 = vmatprep.subr.bf16.mxu0 0
    %509 = vmatpush1.bf16.msra.mxu0 0
    %510 = vmatprep.subr.bf16.mxu0 0
    %511 = vmatpush1.bf16.msra.mxu0 0
    %512 = vmatprep.subr.bf16.mxu0 0
    %513 = vmatpush1.bf16.msra.mxu0 0
    %514 = vmatprep.subr.bf16.mxu0 0
    %515 = vmatpush1.bf16.msra.mxu0 0
    %516 = vmatprep.mubr.bf16.mxu0 0
    %517 = vmatmul.mubr.bf16.gmra.mrb[0].mxu0 %v236
    %v518 = vpop.f32.mrb[0].mxu0
    %v519 = vadd.f32 %v125, %v518
    %v520 = vpop.f32.mrb[0].mxu0
    %v521 = vadd.f32 %v129, %v520
    %v522 = vpop.f32.mrb[0].mxu0
    %v523 = vpop.f32.mrb[0].mxu0
    %524 = vdwg.mxu0
    %525 = vmatprep.subr.bf16.mxu0 %v217
    %526 = vmatpush1.bf16.msra.mxu0 %v216
    %527 = vmatprep.subr.bf16.mxu0 0
    %528 = vmatpush1.bf16.msra.mxu0 0
    %529 = vmatprep.subr.bf16.mxu0 0
    %530 = vmatpush1.bf16.msra.mxu0 0
    %531 = vmatprep.subr.bf16.mxu0 0
    %532 = vmatpush1.bf16.msra.mxu0 0
    %533 = vmatprep.subr.bf16.mxu0 0
    %534 = vmatpush1.bf16.msra.mxu0 0
    %535 = vmatprep.subr.bf16.mxu0 0
    %536 = vmatpush1.bf16.msra.mxu0 0
    %537 = vmatprep.subr.bf16.mxu0 0
    %538 = vmatpush1.bf16.msra.mxu0 0
    %539 = vmatprep.subr.bf16.mxu0 0
    %540 = vmatpush1.bf16.msra.mxu0 0
    %541 = vmatprep.subr.bf16.mxu0 0
    %542 = vmatpush1.bf16.msra.mxu0 0
    %543 = vmatprep.subr.bf16.mxu0 0
    %544 = vmatpush1.bf16.msra.mxu0 0
    %545 = vmatprep.subr.bf16.mxu0 0
    %546 = vmatpush1.bf16.msra.mxu0 0
    %547 = vmatprep.subr.bf16.mxu0 0
    %548 = vmatpush1.bf16.msra.mxu0 0
    %549 = vmatprep.subr.bf16.mxu0 0
    %550 = vmatpush1.bf16.msra.mxu0 0
    %551 = vmatprep.subr.bf16.mxu0 0
    %552 = vmatpush1.bf16.msra.mxu0 0
    %553 = vmatprep.subr.bf16.mxu0 0
    %554 = vmatpush1.bf16.msra.mxu0 0
    %555 = vmatprep.subr.bf16.mxu0 0
    %556 = vmatpush1.bf16.msra.mxu0 0
    %557 = vmatprep.mubr.bf16.mxu0 0
    %558 = vmatmul.mubr.bf16.gmra.mrb[0].mxu0 %v236
    %v559 = vpop.f32.mrb[0].mxu0
    %v560 = vadd.f32 %v133, %v559
    %v561 = vpop.f32.mrb[0].mxu0
    %v562 = vadd.f32 %v137, %v561
    %v563 = vpop.f32.mrb[0].mxu0
    %v564 = vpop.f32.mrb[0].mxu0
    %565 = vdwg.mxu0
    %v582 = vcombine.low %v273, %v275
    %v583 = vcombine.low %v314, %v316
    %v585 = vunpack.c.l.s4 1983009808
    %v586 = vunpack.c.0.s8 %v585
    %v587 = vlaneseq
    %v588 = vshrl.u32 %v587, 7
    %v589 = vsub.s32 %v586, %v588
    %v590 = vrot.slane %v582, %v589
    %v592 = vunpack.c.l.s4 1983009808
    %v593 = vunpack.c.0.s8 %v592
    %v594 = vlaneseq
    %v595 = vshrl.u32 %v594, 7
    %v596 = vsub.s32 %v593, %v595
    %v597 = vrot.slane %v583, %v596
    %v598 = vcombine.low %v590, %v597
    %v599 = vcombine.low %v355, %v357
    %v600 = vcombine.low %v396, %v398
    %v602 = vunpack.c.l.s4 1983009808
    %v603 = vunpack.c.0.s8 %v602
    %v604 = vlaneseq
    %v605 = vshrl.u32 %v604, 7
    %v606 = vsub.s32 %v603, %v605
    %v607 = vrot.slane %v599, %v606
    %v609 = vunpack.c.l.s4 1983009808
    %v610 = vunpack.c.0.s8 %v609
    %v611 = vlaneseq
    %v612 = vshrl.u32 %v611, 7
    %v613 = vsub.s32 %v610, %v612
    %v614 = vrot.slane %v600, %v613
    %v615 = vcombine.low %v607, %v614
    %v616 = vcombine.low %v437, %v439
    %v617 = vcombine.low %v478, %v480
    %v619 = vunpack.c.l.s4 1983009808
    %v620 = vunpack.c.0.s8 %v619
    %v621 = vlaneseq
    %v622 = vshrl.u32 %v621, 7
    %v623 = vsub.s32 %v620, %v622
    %v624 = vrot.slane %v616, %v623
    %v626 = vunpack.c.l.s4 1983009808
    %v627 = vunpack.c.0.s8 %v626
    %v628 = vlaneseq
    %v629 = vshrl.u32 %v628, 7
    %v630 = vsub.s32 %v627, %v629
    %v631 = vrot.slane %v617, %v630
    %v632 = vcombine.low %v624, %v631
    %v633 = vcombine.low %v519, %v521
    %v634 = vcombine.low %v560, %v562
    %v636 = vunpack.c.l.s4 1983009808
    %v637 = vunpack.c.0.s8 %v636
    %v638 = vlaneseq
    %v639 = vshrl.u32 %v638, 7
    %v640 = vsub.s32 %v637, %v639
    %v641 = vrot.slane %v633, %v640
    %v643 = vunpack.c.l.s4 1983009808
    %v644 = vunpack.c.0.s8 %v643
    %v645 = vlaneseq
    %v646 = vshrl.u32 %v645, 7
    %v647 = vsub.s32 %v644, %v646
    %v648 = vrot.slane %v634, %v647
    %v649 = vcombine.low %v641, %v648
    %654 = vst [vmem:[#allocation8] sm:$0xff] %v598
    %655 = vst [vmem:[#allocation8 + $0x8] sm:$0xff] %v615
    %656 = vst [vmem:[#allocation8 + $0x10] sm:$0xff] %v632
    %657 = vst [vmem:[#allocation8 + $0x18] sm:$0xff] %v649
    // Predicated region
    $region26: #{tpu_custom_call.1} parent=1 // pred_check
      _
    $region27: #{tpu_custom_call.1} parent=1 // pred_check_branch
      %659 = sbr.rel (0) target = $region29
    $region28: #{tpu_custom_call.1} parent=1 // pred_region
      %s661 = ssub.s32 512, 512
      %662 = vsyncadd [#allocation4], %s661
      %s664 = sshll.u32 [#allocation8], 4
      %s665 = int_to_ptr.vmem [resolvable:$true] %s664
      %667 = dma.vmem_to_hbm [thread:$0]  %s665, 512, %s3, [#allocation4]
    $region29: #{tpu_custom_call.1} parent=1 // pred_fallthru
      _
    // Predicated region
    $region30: #{tpu_custom_call.1} parent=1 // pred_check
      _
    $region31: #{tpu_custom_call.1} parent=1 // pred_check_branch
      %669 = sbr.rel (0) target = $region33
    $region32: #{tpu_custom_call.1} parent=1 // pred_region
      %670 = dma.done [#allocation4], 512
    $region33: #{tpu_custom_call.1} parent=1 // pred_fallthru
      _
    %671 = vsyncpa [#allocation3], 1
    %672 = vsyncpa [#allocation6], 1
    %673 = vsyncpa [#allocation4], 1

</llo_original>
